<compile_context>
chip_gen: v7x
topology: tpu7x:2x2x1
jax: 0.10.0
libtpu: 0.0.40
codegen_flags: <defaults>
</compile_context>

<pallas_src>
import functools

import jax
import jax.numpy as jnp
from jax.experimental import pallas as pl
from jax.experimental.pallas import tpu as pltpu

EPS = 1e-6  # LayerNormalization eps


def _residual_connection_kernel(x_ref, w_ref, b_ref, alpha_ref, bias_ref, *rest,
                                keep_threshold, keep_scale, matmul_dtype):
    # rest = (bits_ref, o_ref) in training mode, (o_ref,) in eval mode.
    o_ref = rest[-1]
    bits_ref = rest[0] if len(rest) == 2 else None

    x = x_ref[...].astype(jnp.float32)                      # (tm, H)
    h = x.shape[-1]

    # --- LayerNormalization (torch semantics: mean over last dim, unbiased std,
    #     eps added to std, scalar alpha/bias). One-pass sum / sum-of-squares.
    sx = jnp.sum(x, axis=-1, keepdims=True)
    sx2 = jnp.sum(x * x, axis=-1, keepdims=True)
    mean = sx * (1.0 / h)
    var = jnp.maximum(sx2 - sx * mean, 0.0) * (1.0 / (h - 1))   # ddof=1, like torch.std
    std = jnp.sqrt(var)
    scale = alpha_ref[0] / (std + EPS)                      # per-row scale, alpha folded in
    y = (x - mean) * scale + bias_ref[0]

    # --- sublayer: Linear(H, H) on the MXU
    if matmul_dtype is not None:
        y_mm = y.astype(matmul_dtype)
        w_mm = w_ref[...].astype(matmul_dtype)
    else:
        y_mm, w_mm = y, w_ref[...]
    s = jnp.dot(y_mm, w_mm, preferred_element_type=jnp.float32) + b_ref[...]

    # --- dropout (inverted: keep w.p. 1-p, scale kept values by 1/(1-p)).
    #     Keep-test is a single uint32 threshold compare on pre-generated random bits.
    if bits_ref is not None:
        keep = bits_ref[...] >= jnp.uint32(keep_threshold)
        s = jnp.where(keep, s * keep_scale, 0.0)

    # --- residual add
    o_ref[...] = (x + s).astype(o_ref.dtype)


def _invariant_spec(shape):
    """BlockSpec for a grid-invariant operand; single-buffered when supported."""
    index_map = lambda i: (0,) * len(shape)
    try:
        return pl.BlockSpec(shape, index_map, pipeline_mode=pl.Buffered(buffer_count=1))
    except (AttributeError, TypeError):
        return pl.BlockSpec(shape, index_map)


def residual_connection(x, w, b, alpha, bias, *, dropout_p=0.1, train=True,
                        rng_key=None, tm=256, matmul_dtype=None):
    """x: (rows, H) f32; w: (H, H); b: (1, H); alpha, bias: (1,) LayerNorm scalars."""
    R, H = x.shape
    tm = min(int(tm), R)
    assert tm % 8 == 0 or tm == R, "row tile must be sublane-aligned or the full extent"
    assert R % tm == 0, "rows must divide evenly by the row tile"

    use_dropout = bool(train) and float(dropout_p) > 0.0
    keep_threshold = 0
    keep_scale = 1.0

    inputs = [x, w, b, alpha, bias]
    in_specs = [
        pl.BlockSpec((tm, H), lambda i: (i, 0)),                  # x tile
        _invariant_spec((H, H)),                                  # sublayer weight
        _invariant_spec((1, H)),                                  # sublayer bias
        pl.BlockSpec(memory_space=pltpu.MemorySpace.SMEM),        # LN alpha (scalar)
        pl.BlockSpec(memory_space=pltpu.MemorySpace.SMEM),        # LN bias  (scalar)
    ]
    if use_dropout:
        if rng_key is None:
            raise ValueError("rng_key is required when train=True and dropout_p > 0")
        bits = jax.random.bits(rng_key, (R, H), dtype=jnp.uint32)
        keep_threshold = min(int(round(float(dropout_p) * 2.0 ** 32)), 2 ** 32 - 1)
        keep_scale = 1.0 / (1.0 - float(dropout_p))
        inputs.append(bits)
        in_specs.append(pl.BlockSpec((tm, H), lambda i: (i, 0)))  # dropout bits tile

    kernel = functools.partial(
        _residual_connection_kernel,
        keep_threshold=keep_threshold,
        keep_scale=keep_scale,
        matmul_dtype=matmul_dtype,
    )

    # Generous scoped-VMEM budget for large row tiles; keep headroom for v7x (64 MiB).
    f32 = 4
    est = (2 * tm * H * f32          # x, double-buffered
           + 2 * tm * H * f32        # out, double-buffered
           + 2 * H * H * f32         # weight (assume worst case: double-buffered)
           + H * f32)                # bias
    if use_dropout:
        est += 2 * tm * H * 4        # random bits, double-buffered
    vmem_limit = int(min(max(2 * est + (2 << 20), 32 << 20), 56 << 20))

    return pl.pallas_call(
        kernel,
        out_shape=jax.ShapeDtypeStruct((R, H), x.dtype),
        grid_spec=pl.GridSpec(
            grid=(R // tm,),
            in_specs=in_specs,
            out_specs=pl.BlockSpec((tm, H), lambda i: (i, 0)),
        ),
        compiler_params=pltpu.CompilerParams(
            dimension_semantics=("parallel",),       # row tiles are independent
            vmem_limit_bytes=vmem_limit,
        ),
    )(*inputs)


if __name__ == "__main__":
    key = jax.random.PRNGKey(0)
    B, S, H = 2, 8, 128            # batch, seq, hidden
    DROPOUT_P = 0.1

    kx, kw, kb, kdrop = jax.random.split(key, 4)
    x = jax.random.normal(kx, (B, S, H), dtype=jnp.float32)
    # deterministic sublayer (Linear) parameters
    w = jax.random.normal(kw, (H, H), dtype=jnp.float32) * (1.0 / jnp.sqrt(float(H)))
    b = jax.random.normal(kb, (H,), dtype=jnp.float32) * 0.1
    # LayerNormalization parameters: alpha = ones(1), bias = zeros(1)
    alpha = jnp.ones((1,), jnp.float32)
    ln_bias = jnp.zeros((1,), jnp.float32)

    x2 = x.reshape(B * S, H)
    b2 = b.reshape(1, H)

    # Training-mode run (dropout active)
    out_train = residual_connection(x2, w, b2, alpha, ln_bias,
                                    dropout_p=DROPOUT_P, train=True, rng_key=kdrop)
    out_train = jax.block_until_ready(out_train)

    # Eval-mode run (dropout = identity) -> reference check
    out_eval = residual_connection(x2, w, b2, alpha, ln_bias,
                                   dropout_p=DROPOUT_P, train=False)
    out_eval = jax.block_until_ready(out_eval)

    # Pure-JAX reference for eval mode (matches the PyTorch module).
    mean = jnp.mean(x2, axis=-1, keepdims=True)
    std = jnp.std(x2, axis=-1, keepdims=True, ddof=1)        # torch.std is unbiased
    y = alpha[0] * (x2 - mean) / (std + EPS) + ln_bias[0]
    ref = x2 + (jnp.dot(y, w, precision=jax.lax.Precision.HIGHEST) + b)
    assert jnp.allclose(out_eval, ref, atol=1e-3, rtol=1e-3), "mismatch vs reference"

    # Training-mode sanity: dropped positions contribute exactly 0 (out == x there) and
    # the dropped fraction sits in a very loose band around DROPOUT_P.
    dropped_frac = float(jnp.mean((out_train == x2).astype(jnp.float32)))
    assert 0.0 < dropped_frac < 0.5, f"unexpected dropout fraction {dropped_frac}"

    print("KERNEL_OK")
</pallas_src>

<mosaic_0001>
module attributes {stable_mosaic.version = 11 : i64} {
  func.func @_residual_connection_kernel(%arg0: i32, %arg1: memref<16x128xf32, #tpu.memory_space<vmem>>, %arg2: memref<128x128xf32, #tpu.memory_space<vmem>>, %arg3: memref<1x128xf32, #tpu.memory_space<vmem>>, %arg4: memref<1xf32, #tpu.memory_space<smem>>, %arg5: memref<1xf32, #tpu.memory_space<smem>>, %arg6: memref<16x128xi32, #tpu.memory_space<vmem>>, %arg7: memref<16x128xf32, #tpu.memory_space<vmem>>) attributes {dimension_semantics = [#tpu.dimension_semantics<parallel>], iteration_bounds = array<i64: 1>, scalar_prefetch = 0 : i64, scratch_operands = 0 : i64, tpu.core_type = #tpu.core_type<tc>, window_params = [{transform_indices = @transform_0, window_bounds = array<i64: 16, 128>}, {pipeline_mode = #tpu.pipeline_mode<synchronous>, transform_indices = @transform_1, window_bounds = array<i64: 128, 128>}, {pipeline_mode = #tpu.pipeline_mode<synchronous>, transform_indices = @transform_2, window_bounds = array<i64: 1, 128>}, {transform_indices = @transform_3, window_bounds = array<i64: 1>}, {transform_indices = @transform_4, window_bounds = array<i64: 1>}, {transform_indices = @transform_5, window_bounds = array<i64: 16, 128>}, {transform_indices = @transform_6, window_bounds = array<i64: 16, 128>}]} {
    %c0 = arith.constant 0 : index
    %c0_0 = arith.constant 0 : index
    %0 = vector.load %arg1[%c0, %c0_0] : memref<16x128xf32, #tpu.memory_space<vmem>>, vector<16x128xf32>
    %cst = arith.constant dense<0.000000e+00> : vector<16xf32>
    %1 = vector.multi_reduction <add>, %0, %cst [1] : vector<16x128xf32> to vector<16xf32>
    %2 = vector.shape_cast %1 : vector<16xf32> to vector<16x1xf32>
    %3 = arith.mulf %0, %0 : vector<16x128xf32>
    %cst_1 = arith.constant dense<0.000000e+00> : vector<16xf32>
    %4 = vector.multi_reduction <add>, %3, %cst_1 [1] : vector<16x128xf32> to vector<16xf32>
    %5 = vector.shape_cast %4 : vector<16xf32> to vector<16x1xf32>
    %cst_2 = arith.constant 7.812500e-03 : f32
    %6 = vector.broadcast %cst_2 : f32 to vector<16x1xf32>
    %7 = arith.mulf %2, %6 : vector<16x1xf32>
    %8 = arith.mulf %2, %7 : vector<16x1xf32>
    %9 = arith.subf %5, %8 : vector<16x1xf32>
    %cst_3 = arith.constant 0.000000e+00 : f32
    %10 = vector.broadcast %cst_3 : f32 to vector<16x1xf32>
    %11 = arith.maximumf %9, %10 : vector<16x1xf32>
    %cst_4 = arith.constant 0.00787401571 : f32
    %12 = vector.broadcast %cst_4 : f32 to vector<16x1xf32>
    %13 = arith.mulf %11, %12 : vector<16x1xf32>
    %14 = math.sqrt %13 : vector<16x1xf32>
    %c0_5 = arith.constant 0 : index
    %15 = memref.load %arg4[%c0_5] : memref<1xf32, #tpu.memory_space<smem>>
    %cst_6 = arith.constant 9.99999997E-7 : f32
    %16 = vector.broadcast %cst_6 : f32 to vector<16x1xf32>
    %17 = arith.addf %14, %16 : vector<16x1xf32>
    %18 = vector.broadcast %15 : f32 to vector<16x1xf32>
    %19 = arith.divf %18, %17 : vector<16x1xf32>
    %20 = vector.broadcast %7 : vector<16x1xf32> to vector<16x128xf32>
    %21 = arith.subf %0, %20 : vector<16x128xf32>
    %22 = vector.broadcast %19 : vector<16x1xf32> to vector<16x128xf32>
    %23 = arith.mulf %21, %22 : vector<16x128xf32>
    %c0_7 = arith.constant 0 : index
    %24 = memref.load %arg5[%c0_7] : memref<1xf32, #tpu.memory_space<smem>>
    %25 = vector.broadcast %24 : f32 to vector<16x128xf32>
    %26 = arith.addf %23, %25 : vector<16x128xf32>
    %c0_8 = arith.constant 0 : index
    %c0_9 = arith.constant 0 : index
    %27 = vector.load %arg2[%c0_8, %c0_9] : memref<128x128xf32, #tpu.memory_space<vmem>>, vector<128x128xf32>
    %cst_10 = arith.constant dense<0.000000e+00> : vector<16x128xf32>
    %28 = tpu.matmul %26, %27, %cst_10 {dimension_numbers = #tpu.dot_dimension_numbers<[1], [0], [0], [1], [0, 0, 1, 1], [], []>} : vector<16x128xf32>, vector<128x128xf32>, vector<16x128xf32> -> vector<16x128xf32>
    %c0_11 = arith.constant 0 : index
    %c0_12 = arith.constant 0 : index
    %29 = vector.load %arg3[%c0_11, %c0_12] : memref<1x128xf32, #tpu.memory_space<vmem>>, vector<1x128xf32>
    %30 = vector.broadcast %29 : vector<1x128xf32> to vector<16x128xf32>
    %31 = arith.addf %28, %30 : vector<16x128xf32>
    %c0_13 = arith.constant 0 : index
    %c0_14 = arith.constant 0 : index
    %32 = vector.load %arg6[%c0_13, %c0_14] : memref<16x128xi32, #tpu.memory_space<vmem>>, vector<16x128xi32>
    %c429496730_i32 = arith.constant 429496730 : i32
    %33 = vector.broadcast %c429496730_i32 : i32 to vector<16x128xi32>
    %34 = arith.cmpi uge, %32, %33 : vector<16x128xi32>
    %cst_15 = arith.constant 1.11111116 : f32
    %35 = vector.broadcast %cst_15 : f32 to vector<16x128xf32>
    %36 = arith.mulf %31, %35 : vector<16x128xf32>
    %cst_16 = arith.constant 0.000000e+00 : f32
    %37 = vector.broadcast %cst_16 : f32 to vector<16x128xf32>
    %38 = arith.select %34, %36, %37 : vector<16x128xi1>, vector<16x128xf32>
    %39 = arith.addf %0, %38 : vector<16x128xf32>
    %c0_17 = arith.constant 0 : index
    %c0_18 = arith.constant 0 : index
    %40 = vector.load %arg7[%c0_17, %c0_18] : memref<16x128xf32, #tpu.memory_space<vmem>>, vector<16x128xf32>
    tpu.vector_store %arg7[%c0_17, %c0_18], %39 {strides = array<i32>} : memref<16x128xf32, #tpu.memory_space<vmem>>, vector<16x128xf32>,
    return
  }
  func.func @transform_0(%arg0: i32) -> (i32, i32) {
    %c0_i32 = arith.constant 0 : i32
    %c0_i32_0 = arith.constant 0 : i32
    return %arg0, %c0_i32 : i32, i32
  }
  func.func @transform_1(%arg0: i32) -> (i32, i32) {
    %c0_i32 = arith.constant 0 : i32
    %c0_i32_0 = arith.constant 0 : i32
    %c0_i32_1 = arith.constant 0 : i32
    return %c0_i32, %c0_i32_0 : i32, i32
  }
  func.func @transform_2(%arg0: i32) -> (i32, i32) {
    %c0_i32 = arith.constant 0 : i32
    %c0_i32_0 = arith.constant 0 : i32
    %c0_i32_1 = arith.constant 0 : i32
    return %c0_i32, %c0_i32_0 : i32, i32
  }
  func.func @transform_3(%arg0: i32) -> i32 {
    %c0_i32 = arith.constant 0 : i32
    %c0_i32_0 = arith.constant 0 : i32
    return %c0_i32 : i32
  }
  func.func @transform_4(%arg0: i32) -> i32 {
    %c0_i32 = arith.constant 0 : i32
    %c0_i32_0 = arith.constant 0 : i32
    return %c0_i32 : i32
  }
  func.func @transform_5(%arg0: i32) -> (i32, i32) {
    %c0_i32 = arith.constant 0 : i32
    %c0_i32_0 = arith.constant 0 : i32
    return %arg0, %c0_i32 : i32, i32
  }
  func.func @transform_6(%arg0: i32) -> (i32, i32) {
    %c0_i32 = arith.constant 0 : i32
    %c0_i32_0 = arith.constant 0 : i32
    return %arg0, %c0_i32 : i32, i32
  }
}

</mosaic_0001>

<llo_original>
// kernel: tpu_custom_call.1
$region0: #{tpu_custom_call.1}
  #allocation0 [shape = 'u32[]', space=smem, size = 0x4, offset = 0x4, fixed_abs, tag = 'smem constant byte address 0x4 - core index']
  #allocation1 [shape = 'u32[144,128]{1,0:T(1,128)}', space=vmem, size = 0x12000, scoped, tag = 'internal scratch']
  #allocation2 [shape = 'f32[1]{0:T(128)S(6)}', space=smem, size = 0x200, scoped, tag = 'scoped memory for tpu_custom_call.1']
  #allocation3 [shape = 'f32[1]{0:T(128)S(6)}', space=smem, size = 0x200, scoped, tag = 'scoped memory for tpu_custom_call.1']
  %s0 = inlined_call_operand.hbm [shape: f32[16,128], index: 0, kind: input, shape index: {}]
  %s1 = inlined_call_operand.hbm [shape: f32[128,128], index: 1, kind: input, shape index: {}]
  %s2 = inlined_call_operand.vmem [shape: f32[1,128], index: 2, kind: input, shape index: {}]
  %s3 = inlined_call_operand.<no memory space> [shape: f32[1], index: 3, kind: input, shape index: {}]
  %s4 = inlined_call_operand.<no memory space> [shape: f32[1], index: 4, kind: input, shape index: {}]
  %s5 = inlined_call_operand.vmem [shape: u32[16,128], index: 5, kind: input, shape index: {}]
  %s6 = inlined_call_operand.hbm [shape: f32[16,128], index: 6, kind: output, shape index: {}]
  %s7 = sld [smem:[#allocation0]]
  $region42: #{tpu_custom_call.1} parent=0
    _
  %s9 = ssub.s32 1, %s7
  %s10 = scalar_select 0, %s9, %s7
  %11 = sst [smem:[#allocation2]] %s3
  %12 = sst [smem:[#allocation3]] %s4
  $region1: #{tpu_custom_call.1} parent=0
    #allocation4 [shape = 'u8[8192]{0}', space=vmem, size = 0x2000, scoped, tag = 'input window, operand 0, single buffered']
    #allocation5 [shape = 's32[1]{0}', space=sflag, size = 0x4, scoped, tag = 'scoped memory for tpu_custom_call.1']
    #allocation6 [shape = 's32[1]{0}', space=sflag, size = 0x4, scoped, tag = 'scoped memory for tpu_custom_call.1']
    #allocation7 [shape = 'u8[65536]{0}', space=vmem, size = 0x10000, scoped, tag = 'input window, operand 1, single buffered']
    #allocation8 [shape = 's32[1]{0}', space=sflag, size = 0x4, scoped, tag = 'scoped memory for tpu_custom_call.1']
    #allocation9 [shape = 'u8[8192]{0}', space=vmem, size = 0x2000, scoped, tag = 'output window, operand 0, single buffered']
    %13 = vsyncpa [#allocation5], 0
    %14 = vsyncpa [#allocation8], 0
    %15 = vsyncpa [#allocation6], 0
    // Predicated region
    $region2: #{tpu_custom_call.1} parent=1 // pred_check
      _
    $region3: #{tpu_custom_call.1} parent=1 // pred_check_branch
      %17 = sbr.rel (0) target = $region5
    $region4: #{tpu_custom_call.1} parent=1 // pred_region
      %s19 = ssub.s32 256, 256
      %20 = vsyncadd [#allocation5], %s19
      %s21 = sshll.u32 [#allocation4], 4
      %s22 = int_to_ptr.vmem [resolvable:$true] %s21
      %27 = dma.hbm_to_vmem [thread:$0]  %s0, 256, %s22, [#allocation5], 128, 128, 8
    $region5: #{tpu_custom_call.1} parent=1 // pred_fallthru
      _
    // Predicated region
    $region6: #{tpu_custom_call.1} parent=1 // pred_check
      _
    $region7: #{tpu_custom_call.1} parent=1 // pred_check_branch
      %29 = sbr.rel (0) target = $region9
    $region8: #{tpu_custom_call.1} parent=1 // pred_region
      %s31 = ssub.s32 2048, 2048
      %32 = vsyncadd [#allocation8], %s31
      %s33 = sshll.u32 [#allocation7], 4
      %s34 = int_to_ptr.vmem [resolvable:$true] %s33
      %39 = dma.hbm_to_vmem [thread:$0]  %s1, 2048, %s34, [#allocation8], 128, 128, 8
    $region9: #{tpu_custom_call.1} parent=1 // pred_fallthru
      _
    // Predicated region
    $region10: #{tpu_custom_call.1} parent=1 // pred_check
      _
    $region11: #{tpu_custom_call.1} parent=1 // pred_check_branch
      %41 = sbr.rel (0) target = $region13
    $region12: #{tpu_custom_call.1} parent=1 // pred_region
      _
    $region13: #{tpu_custom_call.1} parent=1 // pred_fallthru
      _
    // Predicated region
    $region14: #{tpu_custom_call.1} parent=1 // pred_check
      _
    $region15: #{tpu_custom_call.1} parent=1 // pred_check_branch
      %43 = sbr.rel (0) target = $region17
    $region16: #{tpu_custom_call.1} parent=1 // pred_region
      _
    $region17: #{tpu_custom_call.1} parent=1 // pred_fallthru
      _
    // Predicated region
    $region18: #{tpu_custom_call.1} parent=1 // pred_check
      _
    $region19: #{tpu_custom_call.1} parent=1 // pred_check_branch
      %45 = sbr.rel (0) target = $region21
    $region20: #{tpu_custom_call.1} parent=1 // pred_region
      _
    $region21: #{tpu_custom_call.1} parent=1 // pred_fallthru
      _
    // Predicated region
    $region22: #{tpu_custom_call.1} parent=1 // pred_check
      _
    $region23: #{tpu_custom_call.1} parent=1 // pred_check_branch
      %47 = sbr.rel (0) target = $region25
    $region24: #{tpu_custom_call.1} parent=1 // pred_region
      _
    $region25: #{tpu_custom_call.1} parent=1 // pred_fallthru
      _
    // Predicated region
    $region26: #{tpu_custom_call.1} parent=1 // pred_check
      _
    $region27: #{tpu_custom_call.1} parent=1 // pred_check_branch
      %49 = sbr.rel (0) target = $region29
    $region28: #{tpu_custom_call.1} parent=1 // pred_region
      %50 = dma.done [#allocation5], 256
    $region29: #{tpu_custom_call.1} parent=1 // pred_fallthru
      _
    // Predicated region
    $region30: #{tpu_custom_call.1} parent=1 // pred_check
      _
    $region31: #{tpu_custom_call.1} parent=1 // pred_check_branch
      %52 = sbr.rel (0) target = $region33
    $region32: #{tpu_custom_call.1} parent=1 // pred_region
      %53 = dma.done [#allocation8], 2048
    $region33: #{tpu_custom_call.1} parent=1 // pred_fallthru
      _
    %v54 = vld [vmem:[#allocation4] sm:$0xff]
    %v55 = vld [vmem:[#allocation4 + $0x8] sm:$0xff]
    %56 = vadd.xlane.f32.xlu0 %v54
    %v57 = vpop.xlane.xlu0 %56
    %58 = vadd.xlane.f32.xlu0 %v55
    %v59 = vpop.xlane.xlu0 %58
    %v60 = vmul.f32 %v54, %v54
    %v61 = vmul.f32 %v55, %v55
    %62 = vadd.xlane.f32.xlu0 %v60
    %v63 = vpop.xlane.xlu0 %62
    %64 = vadd.xlane.f32.xlu0 %v61
    %v65 = vpop.xlane.xlu0 %64
    %v66 = vmul.f32 %v57, 0.0078125
    %v67 = vmul.f32 %v59, 0.0078125
    %v68 = vmul.f32 %v57, %v66
    %v69 = vmul.f32 %v59, %v67
    %v70 = vsub.f32 %v63, %v68
    %v71 = vsub.f32 %v65, %v69
    %v72 = vmax.f32 %v70, 0.0
    %v73 = vmax.f32 %v71, 0.0
    %v74 = vmul.f32 %v72, 0.007874016
    %v75 = vmul.f32 %v73, 0.007874016
    %v76 = vrsqrt.pop %v74
    %v77 = vmul.f32 %v74, %v76
    %vm78 = vcmp.eq.f32.partialorder %v74, inf
    %v79 = vsel %vm78, %v74, %v77
    %vm80 = vcmp.eq.f32.partialorder %v74, 0.0
    %v81 = vand.u32 %v74, 2147483648
    %v82 = vsel %vm80, %v81, %v79
    %v83 = vrsqrt.pop %v75
    %v84 = vmul.f32 %v75, %v83
    %vm85 = vcmp.eq.f32.partialorder %v75, inf
    %v86 = vsel %vm85, %v75, %v84
    %vm87 = vcmp.eq.f32.partialorder %v75, 0.0
    %v88 = vand.u32 %v75, 2147483648
    %v89 = vsel %vm87, %v88, %v86
    %s90 = sld [smem:[#allocation2]]
    %v91 = vadd.f32 %v82, 1e-06
    %v92 = vadd.f32 %v89, 1e-06
    %v93 = vstv %s90
    %v94 = vrcp.pop %v91
    %v95 = vmul.f32 %v93, %v94
    %v96 = vrcp.pop %v92
    %v97 = vmul.f32 %v93, %v96
    %v98 = vsub.f32 %v54, %v66
    %v99 = vsub.f32 %v55, %v67
    %v100 = vmul.f32 %v98, %v95
    %v101 = vmul.f32 %v99, %v97
    %s102 = sld [smem:[#allocation3]]
    %v103 = vstv %s102
    %v104 = vadd.f32 %v100, %v103
    %v105 = vadd.f32 %v101, %v103
    %v106 = vld [vmem:[#allocation7] sm:$0xff]
    %v107 = vld [vmem:[#allocation7 + $0x8] sm:$0xff]
    %v108 = vld [vmem:[#allocation7 + $0x10] sm:$0xff]
    %v109 = vld [vmem:[#allocation7 + $0x18] sm:$0xff]
    %v110 = vld [vmem:[#allocation7 + $0x20] sm:$0xff]
    %v111 = vld [vmem:[#allocation7 + $0x28] sm:$0xff]
    %v112 = vld [vmem:[#allocation7 + $0x30] sm:$0xff]
    %v113 = vld [vmem:[#allocation7 + $0x38] sm:$0xff]
    %v114 = vld [vmem:[#allocation7 + $0x40] sm:$0xff]
    %v115 = vld [vmem:[#allocation7 + $0x48] sm:$0xff]
    %v116 = vld [vmem:[#allocation7 + $0x50] sm:$0xff]
    %v117 = vld [vmem:[#allocation7 + $0x58] sm:$0xff]
    %v118 = vld [vmem:[#allocation7 + $0x60] sm:$0xff]
    %v119 = vld [vmem:[#allocation7 + $0x68] sm:$0xff]
    %v120 = vld [vmem:[#allocation7 + $0x70] sm:$0xff]
    %v121 = vld [vmem:[#allocation7 + $0x78] sm:$0xff]
    %v122 = vld [vmem:[%s2] sm:$0x1]
    %v124 = vlaneseq
    %v125 = vshrl.u32 %v124, 7
    %v126 = vsub.s32 0, %v125
    %v127 = vrot.slane %v122, %v126
    %129 = vmatprep.subr.mxu0 0.0
    %130 = vmatpush1.msra.mxu0 %v106
    %131 = vmatprep.subr.mxu0 0.0
    %132 = vmatpush1.msra.mxu0 %v107
    %133 = vmatprep.subr.mxu0 0.0
    %134 = vmatpush1.msra.mxu0 %v108
    %135 = vmatprep.subr.mxu0 0.0
    %136 = vmatpush1.msra.mxu0 %v109
    %137 = vmatprep.subr.mxu0 0.0
    %138 = vmatpush1.msra.mxu0 %v110
    %139 = vmatprep.subr.mxu0 0.0
    %140 = vmatpush1.msra.mxu0 %v111
    %141 = vmatprep.subr.mxu0 0.0
    %142 = vmatpush1.msra.mxu0 %v112
    %143 = vmatprep.subr.mxu0 0.0
    %144 = vmatpush1.msra.mxu0 %v113
    %145 = vmatprep.subr.mxu0 0.0
    %146 = vmatpush1.msra.mxu0 %v114
    %147 = vmatprep.subr.mxu0 0.0
    %148 = vmatpush1.msra.mxu0 %v115
    %149 = vmatprep.subr.mxu0 0.0
    %150 = vmatpush1.msra.mxu0 %v116
    %151 = vmatprep.subr.mxu0 0.0
    %152 = vmatpush1.msra.mxu0 %v117
    %153 = vmatprep.subr.mxu0 0.0
    %154 = vmatpush1.msra.mxu0 %v118
    %155 = vmatprep.subr.mxu0 0.0
    %156 = vmatpush1.msra.mxu0 %v119
    %157 = vmatprep.subr.mxu0 0.0
    %158 = vmatpush1.msra.mxu0 %v120
    %159 = vmatprep.subr.mxu0 0.0
    %160 = vmatpush1.msra.mxu0 %v121
    %161 = vmatprep.subr.mxu0 0.0
    %162 = vmatpush1.msra.mxu0 0.0
    %163 = vmatprep.subr.mxu0 0.0
    %164 = vmatpush1.msra.mxu0 0.0
    %165 = vmatprep.subr.mxu0 0.0
    %166 = vmatpush1.msra.mxu0 0.0
    %167 = vmatprep.subr.mxu0 0.0
    %168 = vmatpush1.msra.mxu0 0.0
    %169 = vmatprep.subr.mxu0 0.0
    %170 = vmatpush1.msra.mxu0 0.0
    %171 = vmatprep.subr.mxu0 0.0
    %172 = vmatpush1.msra.mxu0 0.0
    %173 = vmatprep.subr.mxu0 0.0
    %174 = vmatpush1.msra.mxu0 0.0
    %175 = vmatprep.subr.mxu0 0.0
    %176 = vmatpush1.msra.mxu0 0.0
    %177 = vmatprep.subr.mxu0 0.0
    %178 = vmatpush1.msra.mxu0 0.0
    %179 = vmatprep.subr.mxu0 0.0
    %180 = vmatpush1.msra.mxu0 0.0
    %181 = vmatprep.subr.mxu0 0.0
    %182 = vmatpush1.msra.mxu0 0.0
    %183 = vmatprep.subr.mxu0 0.0
    %184 = vmatpush1.msra.mxu0 0.0
    %185 = vmatprep.subr.mxu0 0.0
    %186 = vmatpush1.msra.mxu0 0.0
    %187 = vmatprep.subr.mxu0 0.0
    %188 = vmatpush1.msra.mxu0 0.0
    %189 = vmatprep.subr.mxu0 0.0
    %190 = vmatpush1.msra.mxu0 0.0
    %191 = vmatprep.subr.mxu0 0.0
    %192 = vmatpush1.msra.mxu0 0.0
    %193 = vmatprep.mubr.f32.mxu0 0.0
    %194 = vmatmul.mubr.f32.gmra.mrb[0].mxu0 %v104
    %v195 = vpop.f32.mrb[0].mxu0
    %v196 = vadd.f32 %v127, %v195
    %v197 = vpop.f32.mrb[0].mxu0
    %198 = vmatprep.mubr.f32.mxu0 0.0
    %199 = vmatmul.mubr.f32.gmra.mrb[0].mxu0 %v105
    %v200 = vpop.f32.mrb[0].mxu0
    %v201 = vadd.f32 %v127, %v200
    %v202 = vpop.f32.mrb[0].mxu0
    %203 = vdwg.mxu0
    %v204 = vld [vmem:[%s5] sm:$0xff]
    %v205 = vld [vmem:[%s5 + $0x8] sm:$0xff]
    %vm206 = vcmp.ge.u32.totalorder %v204, 429496730
    %vm207 = vcmp.ge.u32.totalorder %v205, 429496730
    %v208 = vmul.f32 %v196, 1.1111112
    %v209 = vmul.f32 %v201, 1.1111112
    %v210 = vsel %vm206, %v208, 0.0
    %v211 = vsel %vm207, %v209, 0.0
    %v212 = vadd.f32 %v54, %v210
    %v213 = vadd.f32 %v55, %v211
    %214 = vst [vmem:[#allocation9] sm:$0xff] %v212
    %215 = vst [vmem:[#allocation9 + $0x8] sm:$0xff] %v213
    // Predicated region
    $region34: #{tpu_custom_call.1} parent=1 // pred_check
      _
    $region35: #{tpu_custom_call.1} parent=1 // pred_check_branch
      %217 = sbr.rel (0) target = $region37
    $region36: #{tpu_custom_call.1} parent=1 // pred_region
      %s219 = ssub.s32 256, 256
      %220 = vsyncadd [#allocation6], %s219
      %s221 = sshll.u32 [#allocation9], 4
      %s222 = int_to_ptr.vmem [resolvable:$true] %s221
      %227 = dma.vmem_to_hbm [thread:$0]  %s222, 256, %s6, [#allocation6], 128, 128, 8
    $region37: #{tpu_custom_call.1} parent=1 // pred_fallthru
      _
    // Predicated region
    $region38: #{tpu_custom_call.1} parent=1 // pred_check
      _
    $region39: #{tpu_custom_call.1} parent=1 // pred_check_branch
      %229 = sbr.rel (0) target = $region41
    $region40: #{tpu_custom_call.1} parent=1 // pred_region
      %230 = dma.done [#allocation6], 256
    $region41: #{tpu_custom_call.1} parent=1 // pred_fallthru
      _
    %231 = vsyncpa [#allocation5], 1
    %232 = vsyncpa [#allocation8], 1
    %233 = vsyncpa [#allocation6], 1

</llo_original>
